<compile_context>
chip_gen: v7x
topology: tpu7x:2x2x1
jax: 0.10.0
libtpu: 0.0.40
codegen_flags: <defaults>
</compile_context>

<pallas_src>
import functools
import math

import jax
import jax.numpy as jnp
from jax.experimental import pallas as pl
from jax.experimental.pallas import tpu as pltpu


# ---------------------------------------------------------------------------
# helpers
# ---------------------------------------------------------------------------
def _round_up(n, m):
    return ((n + m - 1) // m) * m


def _largest_tile(n, cap, mult):
    """Largest t <= cap with n % t == 0 and t % mult == 0; falls back to n."""
    cap = min(cap, n)
    t = cap - cap % mult
    while t >= mult:
        if n % t == 0:
            return t
        t -= mult
    return n


# ---------------------------------------------------------------------------
# 1 & 3) tiled matmul kernel:  out[M, N] = x[M, K] @ w[K, N]
# ---------------------------------------------------------------------------
def _matmul_kernel(x_ref, w_ref, o_ref, acc_ref):
    @pl.when(pl.program_id(2) == 0)
    def _():
        acc_ref[...] = jnp.zeros(acc_ref.shape, jnp.float32)

    acc_ref[...] += jnp.dot(x_ref[...], w_ref[...],
                            preferred_element_type=jnp.float32)

    @pl.when(pl.program_id(2) == pl.num_programs(2) - 1)
    def _():
        o_ref[...] = acc_ref[...].astype(o_ref.dtype)


def _matmul(x, w, *, out_dtype, block_m=512, block_n=1024, block_k=1024):
    m, k = x.shape
    k2, n = w.shape
    assert k == k2
    assert k % 128 == 0 and n % 128 == 0, "feature dims must be multiples of 128"
    tm = min(block_m, _round_up(m, 8))
    m_pad = _round_up(m, tm)
    if m_pad != m:
        x = jnp.pad(x, ((0, m_pad - m), (0, 0)))
    tn = _largest_tile(n, block_n, 128)
    tk = _largest_tile(k, block_k, 128)
    grid = (m_pad // tm, n // tn, k // tk)
    out = pl.pallas_call(
        _matmul_kernel,
        out_shape=jax.ShapeDtypeStruct((m_pad, n), out_dtype),
        grid_spec=pltpu.PrefetchScalarGridSpec(
            num_scalar_prefetch=0,
            grid=grid,
            in_specs=[
                pl.BlockSpec((tm, tk), lambda i, j, kk: (i, kk)),
                pl.BlockSpec((tk, tn), lambda i, j, kk: (kk, j)),
            ],
            out_specs=pl.BlockSpec((tm, tn), lambda i, j, kk: (i, j)),
            scratch_shapes=[pltpu.VMEM((tm, tn), jnp.float32)],
        ),
        compiler_params=pltpu.CompilerParams(
            dimension_semantics=("parallel", "parallel", "arbitrary")),
    )(x, w)
    return out[:m]


# ---------------------------------------------------------------------------
# 2) RoPE + GQA flash attention (online softmax over kv tiles)
# ---------------------------------------------------------------------------
def _attn_kernel(q_ref, k_ref, v_ref, cq_ref, sq_ref, ck_ref, sk_ref, msk_ref,
                 o_ref, m_sc, l_sc, acc_sc, *, sm_scale, half):
    ki = pl.program_id(3)

    @pl.when(ki == 0)
    def _():
        m_sc[...] = jnp.full(m_sc.shape, -jnp.inf, jnp.float32)
        l_sc[...] = jnp.zeros(l_sc.shape, jnp.float32)
        acc_sc[...] = jnp.zeros(acc_sc.shape, jnp.float32)

    def rope(x_bf, cos, sin):
        # de-interleaved rotate-half form; cos/sin already hold [c,c] / [-s,s]
        x = x_bf.astype(jnp.float32)
        return (x * cos + pltpu.roll(x, shift=half, axis=1) * sin
                ).astype(jnp.bfloat16)

    q = rope(q_ref[...], cq_ref[...], sq_ref[...])        # (tq, D) bf16
    k = rope(k_ref[...], ck_ref[...], sk_ref[...])        # (tk, D) bf16

    s = jax.lax.dot_general(q, k, (((1,), (1,)), ((), ())),
                            preferred_element_type=jnp.float32)
    s = s * sm_scale + msk_ref[...]

    m_prev = m_sc[...]
    m_new = jnp.maximum(m_prev, s.max(axis=-1, keepdims=True))
    alpha = jnp.exp(m_prev - m_new)
    p = jnp.exp(s - m_new)
    l_sc[...] = alpha * l_sc[...] + p.sum(axis=-1, keepdims=True)
    acc_sc[...] = alpha * acc_sc[...] + jnp.dot(
        p.astype(jnp.bfloat16), v_ref[...], preferred_element_type=jnp.float32)
    m_sc[...] = m_new

    @pl.when(ki == pl.num_programs(3) - 1)
    def _():
        o_ref[...] = (acc_sc[...] *
                      pl.reciprocal(l_sc[...], approx=True)).astype(o_ref.dtype)


def _flash_attention(q, k, v, cos, sin, mask, *, n_rep, sm_scale, out_dtype,
                     block_q=256, block_k=256):
    b, h, s, d = q.shape
    tq = _largest_tile(s, block_q, 8)
    tk = _largest_tile(s, block_k, 128)
    grid = (b, h, s // tq, s // tk)
    kernel = functools.partial(_attn_kernel, sm_scale=sm_scale, half=d // 2)

    q_spec = pl.BlockSpec((None, None, tq, d),
                          lambda bi, hi, qi, ki: (bi, hi, qi, 0))
    kv_spec = pl.BlockSpec((None, None, tk, d),
                           lambda bi, hi, qi, ki: (bi, hi // n_rep, ki, 0))
    cq_spec = pl.BlockSpec((tq, d), lambda bi, hi, qi, ki: (qi, 0))
    ck_spec = pl.BlockSpec((tk, d), lambda bi, hi, qi, ki: (ki, 0))
    msk_spec = pl.BlockSpec((tq, tk), lambda bi, hi, qi, ki: (qi, ki))

    return pl.pallas_call(
        kernel,
        out_shape=jax.ShapeDtypeStruct((b, h, s, d), out_dtype),
        grid_spec=pltpu.PrefetchScalarGridSpec(
            num_scalar_prefetch=0,
            grid=grid,
            in_specs=[q_spec, kv_spec, kv_spec, cq_spec, cq_spec, ck_spec,
                      ck_spec, msk_spec],
            out_specs=q_spec,
            scratch_shapes=[pltpu.VMEM((tq, 1), jnp.float32),
                            pltpu.VMEM((tq, 1), jnp.float32),
                            pltpu.VMEM((tq, d), jnp.float32)],
        ),
        compiler_params=pltpu.CompilerParams(
            dimension_semantics=("parallel", "parallel", "parallel",
                                 "arbitrary")),
    )(q, k, v, cos, sin, cos, sin, mask)


# ---------------------------------------------------------------------------
# full Attention.forward
# ---------------------------------------------------------------------------
def attention_forward(x, wq, wk, wv, wo, freqs_cos, freqs_sin, mask, *,
                      n_heads, n_kv_heads, block_m=512):
    """x: (B,S,dim) f32.  wq: (H*D,dim), wk/wv: (Hkv*D,dim), wo: (dim,H*D)
    (PyTorch Linear .weight layouts).  freqs_cos/sin: (S, D//2) = real/imag of
    freqs_cis for the current positions.  mask: (S,S) additive mask or None."""
    b, s, dim = x.shape
    d = dim // n_heads
    n_rep = n_heads // n_kv_heads

    # ---- one-time wrapper-side weight preprocessing -------------------------
    perm = jnp.concatenate([jnp.arange(0, d, 2), jnp.arange(1, d, 2)])

    def deinterleave(w, nh):                      # permute per-head output rows
        return w.reshape(nh, d, dim)[:, perm, :].reshape(nh * d, dim)

    w_qkv = jnp.concatenate(
        [deinterleave(wq, n_heads), deinterleave(wk, n_kv_heads), wv],
        axis=0).T.astype(jnp.bfloat16)            # (dim, (H + 2*Hkv) * D)

    # rope tables in the de-interleaved layout
    cos2 = jnp.concatenate([freqs_cos, freqs_cos], axis=-1).astype(jnp.float32)
    sin2 = jnp.concatenate([-freqs_sin, freqs_sin], axis=-1).astype(jnp.float32)

    if mask is None:
        mask_in = jnp.zeros((s, s), jnp.float32)
    else:
        # keep it finite so online-softmax rescaling never produces inf - inf
        mask_in = jnp.maximum(mask.astype(jnp.float32), -1e30)

    # ---- 1) fused QKV projection (bf16 cast done here, not per grid step) ---
    x2 = x.reshape(b * s, dim).astype(jnp.bfloat16)
    qkv = _matmul(x2, w_qkv, out_dtype=jnp.bfloat16, block_m=block_m)

    q_sz, kv_sz = n_heads * d, n_kv_heads * d
    q = qkv[:, :q_sz].reshape(b, s, n_heads, d).transpose(0, 2, 1, 3)
    k = qkv[:, q_sz:q_sz + kv_sz].reshape(b, s, n_kv_heads, d).transpose(0, 2, 1, 3)
    v = qkv[:, q_sz + kv_sz:].reshape(b, s, n_kv_heads, d).transpose(0, 2, 1, 3)

    # ---- 2) RoPE + GQA flash attention --------------------------------------
    o = _flash_attention(q, k, v, cos2, sin2, mask_in, n_rep=n_rep,
                         sm_scale=1.0 / math.sqrt(d), out_dtype=jnp.bfloat16)

    # ---- 3) output projection ------------------------------------------------
    o2 = o.transpose(0, 2, 1, 3).reshape(b * s, n_heads * d)
    out = _matmul(o2, wo.T.astype(jnp.bfloat16), out_dtype=jnp.float32,
                  block_m=block_m)
    return out.reshape(b, s, dim)


# ---------------------------------------------------------------------------
# pure-JAX reference (mirrors the PyTorch module, same bf16 cast points)
# ---------------------------------------------------------------------------
def _reference(x, wq, wk, wv, wo, fcos, fsin, mask, n_heads, n_kv_heads):
    B, S, dim = x.shape
    D = dim // n_heads
    n_rep = n_heads // n_kv_heads
    xb = x.astype(jnp.bfloat16)

    def lin(w):
        return jnp.einsum('bsd,od->bso', xb, w.astype(jnp.bfloat16),
                          preferred_element_type=jnp.float32).astype(jnp.bfloat16)

    xq = lin(wq).astype(jnp.float32).reshape(B, S, n_heads, D)
    xk = lin(wk).astype(jnp.float32).reshape(B, S, n_kv_heads, D)
    xv = lin(wv).reshape(B, S, n_kv_heads, D)           # bf16

    def rope(t):   # interleaved pairs, exactly like torch view_as_complex path
        tr = t.reshape(*t.shape[:-1], D // 2, 2)
        re, im = tr[..., 0], tr[..., 1]
        c = fcos[None, :, None, :]
        s_ = fsin[None, :, None, :]
        return jnp.stack([re * c - im * s_, re * s_ + im * c], -1).reshape(t.shape)

    xq = rope(xq).astype(jnp.bfloat16)
    xk = rope(xk).astype(jnp.bfloat16)
    keys = jnp.repeat(xk, n_rep, axis=2)                # repeat_kv
    vals = jnp.repeat(xv, n_rep, axis=2)
    q = jnp.swapaxes(xq, 1, 2)
    k = jnp.swapaxes(keys, 1, 2)
    v = jnp.swapaxes(vals, 1, 2)
    scores = jnp.einsum('bhqd,bhkd->bhqk', q, k,
                        preferred_element_type=jnp.float32) / math.sqrt(D)
    scores = scores + mask[None, None]
    p = jax.nn.softmax(scores, axis=-1)
    o = jnp.einsum('bhqk,bhkd->bhqd', p.astype(jnp.bfloat16), v,
                   preferred_element_type=jnp.float32).astype(jnp.bfloat16)
    o = jnp.swapaxes(o, 1, 2).reshape(B, S, n_heads * D)
    return jnp.einsum('bso,do->bsd', o, wo.astype(jnp.bfloat16),
                      preferred_element_type=jnp.float32)


if __name__ == "__main__":
    # small shapes consistent with the module; head_dim = 128 keeps lanes dense,
    # n_kv_heads < n_heads exercises the repeat_kv (GQA) path.
    batch, seqlen = 2, 8
    dim, n_heads, n_kv_heads = 256, 2, 1
    head_dim = dim // n_heads
    rope_theta = 500000.0

    key = jax.random.PRNGKey(0)
    kx, kq, kk, kv_, ko = jax.random.split(key, 5)
    scale = 1.0 / math.sqrt(dim)
    x = jax.random.normal(kx, (batch, seqlen, dim), jnp.float32)
    wq = jax.random.normal(kq, (n_heads * head_dim, dim), jnp.float32) * scale
    wk = jax.random.normal(kk, (n_kv_heads * head_dim, dim), jnp.float32) * scale
    wv = jax.random.normal(kv_, (n_kv_heads * head_dim, dim), jnp.float32) * scale
    wo = jax.random.normal(ko, (dim, n_heads * head_dim), jnp.float32) * scale

    # freqs_cis (as real cos/sin tables) for positions [0, seqlen), start_pos = 0
    inv = 1.0 / (rope_theta ** (jnp.arange(0, head_dim, 2, dtype=jnp.float32)
                                / head_dim))
    ang = jnp.outer(jnp.arange(seqlen, dtype=jnp.float32), inv)   # (S, D/2)
    fcos, fsin = jnp.cos(ang), jnp.sin(ang)

    # causal mask, as built by the surrounding model
    mask = jnp.triu(jnp.full((seqlen, seqlen), float("-inf"), jnp.float32), k=1)

    y = attention_forward(x, wq, wk, wv, wo, fcos, fsin, mask,
                          n_heads=n_heads, n_kv_heads=n_kv_heads)
    y = jax.block_until_ready(y)
    assert y.shape == (batch, seqlen, dim)

    y_ref = _reference(x, wq, wk, wv, wo, fcos, fsin, mask, n_heads, n_kv_heads)
    max_err = float(jnp.max(jnp.abs(y - y_ref)))
    assert jnp.allclose(y, y_ref, atol=2e-2, rtol=2e-2), max_err

    print("KERNEL_OK")
</pallas_src>

<mosaic_0001>
module attributes {stable_mosaic.version = 11 : i64} {
  func.func @_matmul_kernel(%arg0: i32, %arg1: i32, %arg2: i32, %arg3: memref<16x256xbf16, #tpu.memory_space<vmem>>, %arg4: memref<256x512xbf16, #tpu.memory_space<vmem>>, %arg5: memref<16x512xbf16, #tpu.memory_space<vmem>>, %arg6: memref<16x512xf32, #tpu.memory_space<vmem>>) attributes {dimension_semantics = [#tpu.dimension_semantics<parallel>, #tpu.dimension_semantics<parallel>, #tpu.dimension_semantics<arbitrary>], iteration_bounds = array<i64: 1, 1, 1>, scalar_prefetch = 0 : i64, scratch_operands = 1 : i64, tpu.core_type = #tpu.core_type<tc>, window_params = [{transform_indices = @transform_0, window_bounds = array<i64: 16, 256>}, {transform_indices = @transform_1, window_bounds = array<i64: 256, 512>}, {transform_indices = @transform_2, window_bounds = array<i64: 16, 512>}]} {
    %c0_i32 = arith.constant 0 : i32
    %0 = arith.cmpi eq, %arg2, %c0_i32 : i32
    %1 = arith.extui %0 : i1 to i32
    %c0_i32_0 = arith.constant 0 : i32
    %2 = arith.cmpi ne, %1, %c0_i32_0 : i32
    scf.if %2 {
      %cst_10 = arith.constant 0.000000e+00 : f32
      %12 = vector.broadcast %cst_10 : f32 to vector<16x512xf32>
      %c0_11 = arith.constant 0 : index
      %c0_12 = arith.constant 0 : index
      %13 = vector.load %arg6[%c0_11, %c0_12] : memref<16x512xf32, #tpu.memory_space<vmem>>, vector<16x512xf32>
      tpu.vector_store %arg6[%c0_11, %c0_12], %12 {strides = array<i32>} : memref<16x512xf32, #tpu.memory_space<vmem>>, vector<16x512xf32>,
    } else {
    }
    %c0 = arith.constant 0 : index
    %c0_1 = arith.constant 0 : index
    %3 = vector.load %arg6[%c0, %c0_1] : memref<16x512xf32, #tpu.memory_space<vmem>>, vector<16x512xf32>
    %c0_2 = arith.constant 0 : index
    %c0_3 = arith.constant 0 : index
    %4 = vector.load %arg3[%c0_2, %c0_3] : memref<16x256xbf16, #tpu.memory_space<vmem>>, vector<16x256xbf16>
    %c0_4 = arith.constant 0 : index
    %c0_5 = arith.constant 0 : index
    %5 = vector.load %arg4[%c0_4, %c0_5] : memref<256x512xbf16, #tpu.memory_space<vmem>>, vector<256x512xbf16>
    %cst = arith.constant dense<0.000000e+00> : vector<16x512xf32>
    %6 = tpu.matmul %4, %5, %cst {dimension_numbers = #tpu.dot_dimension_numbers<[1], [0], [0], [1], [0, 0, 1, 1], [], []>} : vector<16x256xbf16>, vector<256x512xbf16>, vector<16x512xf32> -> vector<16x512xf32>
    %7 = arith.addf %3, %6 : vector<16x512xf32>
    %c0_6 = arith.constant 0 : index
    %c0_7 = arith.constant 0 : index
    %8 = vector.load %arg6[%c0_6, %c0_7] : memref<16x512xf32, #tpu.memory_space<vmem>>, vector<16x512xf32>
    tpu.vector_store %arg6[%c0_6, %c0_7], %7 {strides = array<i32>} : memref<16x512xf32, #tpu.memory_space<vmem>>, vector<16x512xf32>,
    %c0_i32_8 = arith.constant 0 : i32
    %9 = arith.cmpi eq, %arg2, %c0_i32_8 : i32
    %10 = arith.extui %9 : i1 to i32
    %c0_i32_9 = arith.constant 0 : i32
    %11 = arith.cmpi ne, %10, %c0_i32_9 : i32
    scf.if %11 {
      %c0_10 = arith.constant 0 : index
      %c0_11 = arith.constant 0 : index
      %12 = vector.load %arg6[%c0_10, %c0_11] : memref<16x512xf32, #tpu.memory_space<vmem>>, vector<16x512xf32>
      %13 = arith.truncf %12 : vector<16x512xf32> to vector<16x512xbf16>
      %c0_12 = arith.constant 0 : index
      %c0_13 = arith.constant 0 : index
      %14 = vector.load %arg5[%c0_12, %c0_13] : memref<16x512xbf16, #tpu.memory_space<vmem>>, vector<16x512xbf16>
      tpu.vector_store %arg5[%c0_12, %c0_13], %13 {strides = array<i32>} : memref<16x512xbf16, #tpu.memory_space<vmem>>, vector<16x512xbf16>,
    } else {
    }
    return
  }
  func.func @transform_0(%arg0: i32, %arg1: i32, %arg2: i32) -> (i32, i32) {
    %c0_i32 = arith.constant 0 : i32
    return %arg0, %arg2 : i32, i32
  }
  func.func @transform_1(%arg0: i32, %arg1: i32, %arg2: i32) -> (i32, i32) {
    %c0_i32 = arith.constant 0 : i32
    return %arg2, %arg1 : i32, i32
  }
  func.func @transform_2(%arg0: i32, %arg1: i32, %arg2: i32) -> (i32, i32) {
    %c0_i32 = arith.constant 0 : i32
    return %arg0, %arg1 : i32, i32
  }
}

</mosaic_0001>

<llo_original>
// kernel: tpu_custom_call.1
$region0: #{tpu_custom_call.1}
  #allocation0 [shape = 'u32[]', space=smem, size = 0x4, offset = 0x4, fixed_abs, tag = 'smem constant byte address 0x4 - core index']
  #allocation1 [shape = 'u32[144,128]{1,0:T(1,128)}', space=vmem, size = 0x12000, scoped, tag = 'internal scratch']
  #allocation2 [shape = 'f32[16,512]{1,0:T(8,128)}', space=vmem, size = 0x8000, scoped, tag = 'scratch operand']
  %s0 = inlined_call_operand.hbm [shape: bf16[16,256], index: 0, kind: input, shape index: {}]
  %s1 = inlined_call_operand.hbm [shape: bf16[256,512], index: 1, kind: input, shape index: {}]
  %s2 = inlined_call_operand.hbm [shape: bf16[16,512], index: 2, kind: output, shape index: {}]
  %s3 = sld [smem:[#allocation0]]
  $region34: #{tpu_custom_call.1} parent=0
    _
  %s5 = ssub.s32 1, %s3
  %s6 = scalar_select 0, %s5, %s3
  $region1: #{tpu_custom_call.1} parent=0
    #allocation3 [shape = 'u8[8192]{0}', space=vmem, size = 0x2000, scoped, tag = 'input window, operand 0, single buffered']
    #allocation4 [shape = 's32[1]{0}', space=sflag, size = 0x4, scoped, tag = 'scoped memory for tpu_custom_call.1']
    #allocation5 [shape = 's32[1]{0}', space=sflag, size = 0x4, scoped, tag = 'scoped memory for tpu_custom_call.1']
    #allocation6 [shape = 'u8[262144]{0}', space=vmem, size = 0x40000, scoped, tag = 'input window, operand 1, single buffered']
    #allocation7 [shape = 's32[1]{0}', space=sflag, size = 0x4, scoped, tag = 'scoped memory for tpu_custom_call.1']
    #allocation8 [shape = 'u8[16384]{0}', space=vmem, size = 0x4000, scoped, tag = 'output window, operand 0, single buffered']
    %7 = vsyncpa [#allocation4], 0
    %8 = vsyncpa [#allocation7], 0
    %9 = vsyncpa [#allocation5], 0
    // Predicated region
    $region2: #{tpu_custom_call.1} parent=1 // pred_check
      _
    $region3: #{tpu_custom_call.1} parent=1 // pred_check_branch
      %11 = sbr.rel (0) target = $region5
    $region4: #{tpu_custom_call.1} parent=1 // pred_region
      %s13 = ssub.s32 256, 256
      %14 = vsyncadd [#allocation4], %s13
      %s15 = sshll.u32 [#allocation3], 4
      %s16 = int_to_ptr.vmem [resolvable:$true] %s15
      %21 = dma.hbm_to_vmem [thread:$0]  %s0, 256, %s16, [#allocation4], 128, 128, 8
    $region5: #{tpu_custom_call.1} parent=1 // pred_fallthru
      _
    // Predicated region
    $region6: #{tpu_custom_call.1} parent=1 // pred_check
      _
    $region7: #{tpu_custom_call.1} parent=1 // pred_check_branch
      %23 = sbr.rel (0) target = $region9
    $region8: #{tpu_custom_call.1} parent=1 // pred_region
      %s25 = ssub.s32 8192, 8192
      %26 = vsyncadd [#allocation7], %s25
      %s27 = sshll.u32 [#allocation6], 4
      %s28 = int_to_ptr.vmem [resolvable:$true] %s27
      %33 = dma.hbm_to_vmem [thread:$0]  %s1, 8192, %s28, [#allocation7], 256, 256, 16
    $region9: #{tpu_custom_call.1} parent=1 // pred_fallthru
      _
    // Predicated region
    $region10: #{tpu_custom_call.1} parent=1 // pred_check
      _
    $region11: #{tpu_custom_call.1} parent=1 // pred_check_branch
      %35 = sbr.rel (0) target = $region13
    $region12: #{tpu_custom_call.1} parent=1 // pred_region
      %36 = dma.done [#allocation4], 256
    $region13: #{tpu_custom_call.1} parent=1 // pred_fallthru
      _
    // Predicated region
    $region14: #{tpu_custom_call.1} parent=1 // pred_check
      _
    $region15: #{tpu_custom_call.1} parent=1 // pred_check_branch
      %38 = sbr.rel (0) target = $region17
    $region16: #{tpu_custom_call.1} parent=1 // pred_region
      %39 = dma.done [#allocation7], 8192
    $region17: #{tpu_custom_call.1} parent=1 // pred_fallthru
      _
    %p40 = scmp.eq.s32.totalorder 0, 0
    // Predicated region
    $region18: #{tpu_custom_call.1} parent=1 // pred_check
      %p41 = pneg %p40
    $region19: #{tpu_custom_call.1} parent=1 // pred_check_branch
      %43 = sbr.rel (%p41) target = $region21
    $region20: #{tpu_custom_call.1} parent=1 // pred_region
      %44 = vst [vmem:[#allocation2] sm:$0xff] 0.0
      %45 = vst [vmem:[#allocation2 + $0x8] sm:$0xff] 0.0
      %46 = vst [vmem:[#allocation2 + $0x10] sm:$0xff] 0.0
      %47 = vst [vmem:[#allocation2 + $0x18] sm:$0xff] 0.0
      %48 = vst [vmem:[#allocation2 + $0x20] sm:$0xff] 0.0
      %49 = vst [vmem:[#allocation2 + $0x28] sm:$0xff] 0.0
      %50 = vst [vmem:[#allocation2 + $0x30] sm:$0xff] 0.0
      %51 = vst [vmem:[#allocation2 + $0x38] sm:$0xff] 0.0
    $region21: #{tpu_custom_call.1} parent=1 // pred_fallthru
      _
    %v52 = vld [vmem:[#allocation2] sm:$0xff]
    %v53 = vld [vmem:[#allocation2 + $0x8] sm:$0xff]
    %v54 = vld [vmem:[#allocation2 + $0x10] sm:$0xff]
    %v55 = vld [vmem:[#allocation2 + $0x18] sm:$0xff]
    %v56 = vld [vmem:[#allocation2 + $0x20] sm:$0xff]
    %v57 = vld [vmem:[#allocation2 + $0x28] sm:$0xff]
    %v58 = vld [vmem:[#allocation2 + $0x30] sm:$0xff]
    %v59 = vld [vmem:[#allocation2 + $0x38] sm:$0xff]
    %v60 = vld [vmem:[#allocation3] sm:$0xff]
    %v61 = vld [vmem:[#allocation3 + $0x8] sm:$0xff]
    %v62 = vld [vmem:[#allocation6] sm:$0xff]
    %v63 = vld [vmem:[#allocation6 + $0x8] sm:$0xff]
    %v64 = vld [vmem:[#allocation6 + $0x10] sm:$0xff]
    %v65 = vld [vmem:[#allocation6 + $0x18] sm:$0xff]
    %v66 = vld [vmem:[#allocation6 + $0x20] sm:$0xff]
    %v67 = vld [vmem:[#allocation6 + $0x28] sm:$0xff]
    %v68 = vld [vmem:[#allocation6 + $0x30] sm:$0xff]
    %v69 = vld [vmem:[#allocation6 + $0x38] sm:$0xff]
    %v70 = vld [vmem:[#allocation6 + $0x40] sm:$0xff]
    %v71 = vld [vmem:[#allocation6 + $0x48] sm:$0xff]
    %v72 = vld [vmem:[#allocation6 + $0x50] sm:$0xff]
    %v73 = vld [vmem:[#allocation6 + $0x58] sm:$0xff]
    %v74 = vld [vmem:[#allocation6 + $0x60] sm:$0xff]
    %v75 = vld [vmem:[#allocation6 + $0x68] sm:$0xff]
    %v76 = vld [vmem:[#allocation6 + $0x70] sm:$0xff]
    %v77 = vld [vmem:[#allocation6 + $0x78] sm:$0xff]
    %v78 = vld [vmem:[#allocation6 + $0x80] sm:$0xff]
    %v79 = vld [vmem:[#allocation6 + $0x88] sm:$0xff]
    %v80 = vld [vmem:[#allocation6 + $0x90] sm:$0xff]
    %v81 = vld [vmem:[#allocation6 + $0x98] sm:$0xff]
    %v82 = vld [vmem:[#allocation6 + $0xa0] sm:$0xff]
    %v83 = vld [vmem:[#allocation6 + $0xa8] sm:$0xff]
    %v84 = vld [vmem:[#allocation6 + $0xb0] sm:$0xff]
    %v85 = vld [vmem:[#allocation6 + $0xb8] sm:$0xff]
    %v86 = vld [vmem:[#allocation6 + $0xc0] sm:$0xff]
    %v87 = vld [vmem:[#allocation6 + $0xc8] sm:$0xff]
    %v88 = vld [vmem:[#allocation6 + $0xd0] sm:$0xff]
    %v89 = vld [vmem:[#allocation6 + $0xd8] sm:$0xff]
    %v90 = vld [vmem:[#allocation6 + $0xe0] sm:$0xff]
    %v91 = vld [vmem:[#allocation6 + $0xe8] sm:$0xff]
    %v92 = vld [vmem:[#allocation6 + $0xf0] sm:$0xff]
    %v93 = vld [vmem:[#allocation6 + $0xf8] sm:$0xff]
    %v94 = vld [vmem:[#allocation6 + $0x100] sm:$0xff]
    %v95 = vld [vmem:[#allocation6 + $0x108] sm:$0xff]
    %v96 = vld [vmem:[#allocation6 + $0x110] sm:$0xff]
    %v97 = vld [vmem:[#allocation6 + $0x118] sm:$0xff]
    %v98 = vld [vmem:[#allocation6 + $0x120] sm:$0xff]
    %v99 = vld [vmem:[#allocation6 + $0x128] sm:$0xff]
    %v100 = vld [vmem:[#allocation6 + $0x130] sm:$0xff]
    %v101 = vld [vmem:[#allocation6 + $0x138] sm:$0xff]
    %v102 = vld [vmem:[#allocation6 + $0x140] sm:$0xff]
    %v103 = vld [vmem:[#allocation6 + $0x148] sm:$0xff]
    %v104 = vld [vmem:[#allocation6 + $0x150] sm:$0xff]
    %v105 = vld [vmem:[#allocation6 + $0x158] sm:$0xff]
    %v106 = vld [vmem:[#allocation6 + $0x160] sm:$0xff]
    %v107 = vld [vmem:[#allocation6 + $0x168] sm:$0xff]
    %v108 = vld [vmem:[#allocation6 + $0x170] sm:$0xff]
    %v109 = vld [vmem:[#allocation6 + $0x178] sm:$0xff]
    %v110 = vld [vmem:[#allocation6 + $0x180] sm:$0xff]
    %v111 = vld [vmem:[#allocation6 + $0x188] sm:$0xff]
    %v112 = vld [vmem:[#allocation6 + $0x190] sm:$0xff]
    %v113 = vld [vmem:[#allocation6 + $0x198] sm:$0xff]
    %v114 = vld [vmem:[#allocation6 + $0x1a0] sm:$0xff]
    %v115 = vld [vmem:[#allocation6 + $0x1a8] sm:$0xff]
    %v116 = vld [vmem:[#allocation6 + $0x1b0] sm:$0xff]
    %v117 = vld [vmem:[#allocation6 + $0x1b8] sm:$0xff]
    %v118 = vld [vmem:[#allocation6 + $0x1c0] sm:$0xff]
    %v119 = vld [vmem:[#allocation6 + $0x1c8] sm:$0xff]
    %v120 = vld [vmem:[#allocation6 + $0x1d0] sm:$0xff]
    %v121 = vld [vmem:[#allocation6 + $0x1d8] sm:$0xff]
    %v122 = vld [vmem:[#allocation6 + $0x1e0] sm:$0xff]
    %v123 = vld [vmem:[#allocation6 + $0x1e8] sm:$0xff]
    %v124 = vld [vmem:[#allocation6 + $0x1f0] sm:$0xff]
    %v125 = vld [vmem:[#allocation6 + $0x1f8] sm:$0xff]
    %v128 = vunpack.c.l.b16 %v60
    %v129 = vunpack.c.h.b16 %v60
    %v130 = vunpack.c.l.b16 %v61
    %v131 = vunpack.c.h.b16 %v61
    %v132 = vpack.c.b16 %v130, %v128
    %v133 = vpack.c.b16 %v131, %v129
    %v200 = vunpack.c.l.b16 %v62
    %v201 = vunpack.c.h.b16 %v62
    %v202 = vunpack.c.l.b16 %v63
    %v203 = vunpack.c.h.b16 %v63
    %v204 = vunpack.c.l.b16 %v64
    %v205 = vunpack.c.h.b16 %v64
    %v206 = vunpack.c.l.b16 %v65
    %v207 = vunpack.c.h.b16 %v65
    %v208 = vunpack.c.l.b16 %v66
    %v209 = vunpack.c.h.b16 %v66
    %v210 = vunpack.c.l.b16 %v67
    %v211 = vunpack.c.h.b16 %v67
    %v212 = vunpack.c.l.b16 %v68
    %v213 = vunpack.c.h.b16 %v68
    %v214 = vunpack.c.l.b16 %v69
    %v215 = vunpack.c.h.b16 %v69
    %v216 = vunpack.c.l.b16 %v70
    %v217 = vunpack.c.h.b16 %v70
    %v218 = vunpack.c.l.b16 %v71
    %v219 = vunpack.c.h.b16 %v71
    %v220 = vunpack.c.l.b16 %v72
    %v221 = vunpack.c.h.b16 %v72
    %v222 = vunpack.c.l.b16 %v73
    %v223 = vunpack.c.h.b16 %v73
    %v224 = vunpack.c.l.b16 %v74
    %v225 = vunpack.c.h.b16 %v74
    %v226 = vunpack.c.l.b16 %v75
    %v227 = vunpack.c.h.b16 %v75
    %v228 = vunpack.c.l.b16 %v76
    %v229 = vunpack.c.h.b16 %v76
    %v230 = vunpack.c.l.b16 %v77
    %v231 = vunpack.c.h.b16 %v77
    %v232 = vunpack.c.l.b16 %v78
    %v233 = vunpack.c.h.b16 %v78
    %v234 = vunpack.c.l.b16 %v79
    %v235 = vunpack.c.h.b16 %v79
    %v236 = vunpack.c.l.b16 %v80
    %v237 = vunpack.c.h.b16 %v80
    %v238 = vunpack.c.l.b16 %v81
    %v239 = vunpack.c.h.b16 %v81
    %v240 = vunpack.c.l.b16 %v82
    %v241 = vunpack.c.h.b16 %v82
    %v242 = vunpack.c.l.b16 %v83
    %v243 = vunpack.c.h.b16 %v83
    %v244 = vunpack.c.l.b16 %v84
    %v245 = vunpack.c.h.b16 %v84
    %v246 = vunpack.c.l.b16 %v85
    %v247 = vunpack.c.h.b16 %v85
    %v248 = vunpack.c.l.b16 %v86
    %v249 = vunpack.c.h.b16 %v86
    %v250 = vunpack.c.l.b16 %v87
    %v251 = vunpack.c.h.b16 %v87
    %v252 = vunpack.c.l.b16 %v88
    %v253 = vunpack.c.h.b16 %v88
    %v254 = vunpack.c.l.b16 %v89
    %v255 = vunpack.c.h.b16 %v89
    %v256 = vunpack.c.l.b16 %v90
    %v257 = vunpack.c.h.b16 %v90
    %v258 = vunpack.c.l.b16 %v91
    %v259 = vunpack.c.h.b16 %v91
    %v260 = vunpack.c.l.b16 %v92
    %v261 = vunpack.c.h.b16 %v92
    %v262 = vunpack.c.l.b16 %v93
    %v263 = vunpack.c.h.b16 %v93
    %v264 = vunpack.c.l.b16 %v94
    %v265 = vunpack.c.h.b16 %v94
    %v266 = vunpack.c.l.b16 %v95
    %v267 = vunpack.c.h.b16 %v95
    %v268 = vunpack.c.l.b16 %v96
    %v269 = vunpack.c.h.b16 %v96
    %v270 = vunpack.c.l.b16 %v97
    %v271 = vunpack.c.h.b16 %v97
    %v272 = vunpack.c.l.b16 %v98
    %v273 = vunpack.c.h.b16 %v98
    %v274 = vunpack.c.l.b16 %v99
    %v275 = vunpack.c.h.b16 %v99
    %v276 = vunpack.c.l.b16 %v100
    %v277 = vunpack.c.h.b16 %v100
    %v278 = vunpack.c.l.b16 %v101
    %v279 = vunpack.c.h.b16 %v101
    %v280 = vunpack.c.l.b16 %v102
    %v281 = vunpack.c.h.b16 %v102
    %v282 = vunpack.c.l.b16 %v103
    %v283 = vunpack.c.h.b16 %v103
    %v284 = vunpack.c.l.b16 %v104
    %v285 = vunpack.c.h.b16 %v104
    %v286 = vunpack.c.l.b16 %v105
    %v287 = vunpack.c.h.b16 %v105
    %v288 = vunpack.c.l.b16 %v106
    %v289 = vunpack.c.h.b16 %v106
    %v290 = vunpack.c.l.b16 %v107
    %v291 = vunpack.c.h.b16 %v107
    %v292 = vunpack.c.l.b16 %v108
    %v293 = vunpack.c.h.b16 %v108
    %v294 = vunpack.c.l.b16 %v109
    %v295 = vunpack.c.h.b16 %v109
    %v296 = vunpack.c.l.b16 %v110
    %v297 = vunpack.c.h.b16 %v110
    %v298 = vunpack.c.l.b16 %v111
    %v299 = vunpack.c.h.b16 %v111
    %v300 = vunpack.c.l.b16 %v112
    %v301 = vunpack.c.h.b16 %v112
    %v302 = vunpack.c.l.b16 %v113
    %v303 = vunpack.c.h.b16 %v113
    %v304 = vunpack.c.l.b16 %v114
    %v305 = vunpack.c.h.b16 %v114
    %v306 = vunpack.c.l.b16 %v115
    %v307 = vunpack.c.h.b16 %v115
    %v308 = vunpack.c.l.b16 %v116
    %v309 = vunpack.c.h.b16 %v116
    %v310 = vunpack.c.l.b16 %v117
    %v311 = vunpack.c.h.b16 %v117
    %v312 = vunpack.c.l.b16 %v118
    %v313 = vunpack.c.h.b16 %v118
    %v314 = vunpack.c.l.b16 %v119
    %v315 = vunpack.c.h.b16 %v119
    %v316 = vunpack.c.l.b16 %v120
    %v317 = vunpack.c.h.b16 %v120
    %v318 = vunpack.c.l.b16 %v121
    %v319 = vunpack.c.h.b16 %v121
    %v320 = vunpack.c.l.b16 %v122
    %v321 = vunpack.c.h.b16 %v122
    %v322 = vunpack.c.l.b16 %v123
    %v323 = vunpack.c.h.b16 %v123
    %v324 = vunpack.c.l.b16 %v124
    %v325 = vunpack.c.h.b16 %v124
    %v326 = vunpack.c.l.b16 %v125
    %v327 = vunpack.c.h.b16 %v125
    %v328 = vpack.c.b16 %v204, %v200
    %v329 = vpack.c.b16 %v205, %v201
    %v330 = vpack.c.b16 %v206, %v202
    %v331 = vpack.c.b16 %v207, %v203
    %v332 = vpack.c.b16 %v212, %v208
    %v333 = vpack.c.b16 %v213, %v209
    %v334 = vpack.c.b16 %v214, %v210
    %v335 = vpack.c.b16 %v215, %v211
    %v336 = vpack.c.b16 %v220, %v216
    %v337 = vpack.c.b16 %v221, %v217
    %v338 = vpack.c.b16 %v222, %v218
    %v339 = vpack.c.b16 %v223, %v219
    %v340 = vpack.c.b16 %v228, %v224
    %v341 = vpack.c.b16 %v229, %v225
    %v342 = vpack.c.b16 %v230, %v226
    %v343 = vpack.c.b16 %v231, %v227
    %v344 = vpack.c.b16 %v236, %v232
    %v345 = vpack.c.b16 %v237, %v233
    %v346 = vpack.c.b16 %v238, %v234
    %v347 = vpack.c.b16 %v239, %v235
    %v348 = vpack.c.b16 %v244, %v240
    %v349 = vpack.c.b16 %v245, %v241
    %v350 = vpack.c.b16 %v246, %v242
    %v351 = vpack.c.b16 %v247, %v243
    %v352 = vpack.c.b16 %v252, %v248
    %v353 = vpack.c.b16 %v253, %v249
    %v354 = vpack.c.b16 %v254, %v250
    %v355 = vpack.c.b16 %v255, %v251
    %v356 = vpack.c.b16 %v260, %v256
    %v357 = vpack.c.b16 %v261, %v257
    %v358 = vpack.c.b16 %v262, %v258
    %v359 = vpack.c.b16 %v263, %v259
    %v360 = vpack.c.b16 %v268, %v264
    %v361 = vpack.c.b16 %v269, %v265
    %v362 = vpack.c.b16 %v270, %v266
    %v363 = vpack.c.b16 %v271, %v267
    %v364 = vpack.c.b16 %v276, %v272
    %v365 = vpack.c.b16 %v277, %v273
    %v366 = vpack.c.b16 %v278, %v274
    %v367 = vpack.c.b16 %v279, %v275
    %v368 = vpack.c.b16 %v284, %v280
    %v369 = vpack.c.b16 %v285, %v281
    %v370 = vpack.c.b16 %v286, %v282
    %v371 = vpack.c.b16 %v287, %v283
    %v372 = vpack.c.b16 %v292, %v288
    %v373 = vpack.c.b16 %v293, %v289
    %v374 = vpack.c.b16 %v294, %v290
    %v375 = vpack.c.b16 %v295, %v291
    %v376 = vpack.c.b16 %v300, %v296
    %v377 = vpack.c.b16 %v301, %v297
    %v378 = vpack.c.b16 %v302, %v298
    %v379 = vpack.c.b16 %v303, %v299
    %v380 = vpack.c.b16 %v308, %v304
    %v381 = vpack.c.b16 %v309, %v305
    %v382 = vpack.c.b16 %v310, %v306
    %v383 = vpack.c.b16 %v311, %v307
    %v384 = vpack.c.b16 %v316, %v312
    %v385 = vpack.c.b16 %v317, %v313
    %v386 = vpack.c.b16 %v318, %v314
    %v387 = vpack.c.b16 %v319, %v315
    %v388 = vpack.c.b16 %v324, %v320
    %v389 = vpack.c.b16 %v325, %v321
    %v390 = vpack.c.b16 %v326, %v322
    %v391 = vpack.c.b16 %v327, %v323
    %456 = vmatprep.subr.bf16.mxu0 %v329
    %457 = vmatpush1.bf16.msra.mxu0 %v328
    %458 = vmatprep.subr.bf16.mxu0 %v333
    %459 = vmatpush1.bf16.msra.mxu0 %v332
    %460 = vmatprep.subr.bf16.mxu0 %v337
    %461 = vmatpush1.bf16.msra.mxu0 %v336
    %462 = vmatprep.subr.bf16.mxu0 %v341
    %463 = vmatpush1.bf16.msra.mxu0 %v340
    %464 = vmatprep.subr.bf16.mxu0 %v345
    %465 = vmatpush1.bf16.msra.mxu0 %v344
    %466 = vmatprep.subr.bf16.mxu0 %v349
    %467 = vmatpush1.bf16.msra.mxu0 %v348
    %468 = vmatprep.subr.bf16.mxu0 %v353
    %469 = vmatpush1.bf16.msra.mxu0 %v352
    %470 = vmatprep.subr.bf16.mxu0 %v357
    %471 = vmatpush1.bf16.msra.mxu0 %v356
    %472 = vmatprep.subr.bf16.mxu0 %v361
    %473 = vmatpush1.bf16.msra.mxu0 %v360
    %474 = vmatprep.subr.bf16.mxu0 %v365
    %475 = vmatpush1.bf16.msra.mxu0 %v364
    %476 = vmatprep.subr.bf16.mxu0 %v369
    %477 = vmatpush1.bf16.msra.mxu0 %v368
    %478 = vmatprep.subr.bf16.mxu0 %v373
    %479 = vmatpush1.bf16.msra.mxu0 %v372
    %480 = vmatprep.subr.bf16.mxu0 %v377
    %481 = vmatpush1.bf16.msra.mxu0 %v376
    %482 = vmatprep.subr.bf16.mxu0 %v381
    %483 = vmatpush1.bf16.msra.mxu0 %v380
    %484 = vmatprep.subr.bf16.mxu0 %v385
    %485 = vmatpush1.bf16.msra.mxu0 %v384
    %486 = vmatprep.subr.bf16.mxu0 %v389
    %487 = vmatpush1.bf16.msra.mxu0 %v388
    %488 = vmatprep.mubr.bf16.mxu0 %v133
    %489 = vmatmul.mubr.bf16.gmra.mrb[0].mxu0 %v132
    %v490 = vpop.f32.mrb[0].mxu0
    %v491 = vadd.f32 0.0, %v490
    %v492 = vpop.f32.mrb[0].mxu0
    %v493 = vadd.f32 0.0, %v492
    %v494 = vpop.f32.mrb[0].mxu0
    %v495 = vadd.f32 0.0, %v494
    %v496 = vpop.f32.mrb[0].mxu0
    %v497 = vadd.f32 0.0, %v496
    %498 = vdwg.mxu0
    %499 = vmatprep.subr.bf16.mxu0 %v331
    %500 = vmatpush1.bf16.msra.mxu0 %v330
    %501 = vmatprep.subr.bf16.mxu0 %v335
    %502 = vmatpush1.bf16.msra.mxu0 %v334
    %503 = vmatprep.subr.bf16.mxu0 %v339
    %504 = vmatpush1.bf16.msra.mxu0 %v338
    %505 = vmatprep.subr.bf16.mxu0 %v343
    %506 = vmatpush1.bf16.msra.mxu0 %v342
    %507 = vmatprep.subr.bf16.mxu0 %v347
    %508 = vmatpush1.bf16.msra.mxu0 %v346
    %509 = vmatprep.subr.bf16.mxu0 %v351
    %510 = vmatpush1.bf16.msra.mxu0 %v350
    %511 = vmatprep.subr.bf16.mxu0 %v355
    %512 = vmatpush1.bf16.msra.mxu0 %v354
    %513 = vmatprep.subr.bf16.mxu0 %v359
    %514 = vmatpush1.bf16.msra.mxu0 %v358
    %515 = vmatprep.subr.bf16.mxu0 %v363
    %516 = vmatpush1.bf16.msra.mxu0 %v362
    %517 = vmatprep.subr.bf16.mxu0 %v367
    %518 = vmatpush1.bf16.msra.mxu0 %v366
    %519 = vmatprep.subr.bf16.mxu0 %v371
    %520 = vmatpush1.bf16.msra.mxu0 %v370
    %521 = vmatprep.subr.bf16.mxu0 %v375
    %522 = vmatpush1.bf16.msra.mxu0 %v374
    %523 = vmatprep.subr.bf16.mxu0 %v379
    %524 = vmatpush1.bf16.msra.mxu0 %v378
    %525 = vmatprep.subr.bf16.mxu0 %v383
    %526 = vmatpush1.bf16.msra.mxu0 %v382
    %527 = vmatprep.subr.bf16.mxu0 %v387
    %528 = vmatpush1.bf16.msra.mxu0 %v386
    %529 = vmatprep.subr.bf16.mxu0 %v391
    %530 = vmatpush1.bf16.msra.mxu0 %v390
    %531 = vmatprep.mubr.bf16.mxu0 %v133
    %532 = vmatmul.mubr.bf16.gmra.mrb[0].mxu0 %v132
    %v533 = vpop.f32.mrb[0].mxu0
    %v534 = vadd.f32 0.0, %v533
    %v535 = vpop.f32.mrb[0].mxu0
    %v536 = vadd.f32 0.0, %v535
    %v537 = vpop.f32.mrb[0].mxu0
    %v538 = vadd.f32 0.0, %v537
    %v539 = vpop.f32.mrb[0].mxu0
    %v540 = vadd.f32 0.0, %v539
    %541 = vdwg.mxu0
    %v542 = vadd.f32 %v52, %v491
    %v543 = vadd.f32 %v53, %v493
    %v544 = vadd.f32 %v54, %v534
    %v545 = vadd.f32 %v55, %v536
    %v546 = vadd.f32 %v56, %v495
    %v547 = vadd.f32 %v57, %v497
    %v548 = vadd.f32 %v58, %v538
    %v549 = vadd.f32 %v59, %v540
    %550 = vst [vmem:[#allocation2] sm:$0xff] %v542
    %551 = vst [vmem:[#allocation2 + $0x8] sm:$0xff] %v543
    %552 = vst [vmem:[#allocation2 + $0x10] sm:$0xff] %v544
    %553 = vst [vmem:[#allocation2 + $0x18] sm:$0xff] %v545
    %554 = vst [vmem:[#allocation2 + $0x20] sm:$0xff] %v546
    %555 = vst [vmem:[#allocation2 + $0x28] sm:$0xff] %v547
    %556 = vst [vmem:[#allocation2 + $0x30] sm:$0xff] %v548
    %557 = vst [vmem:[#allocation2 + $0x38] sm:$0xff] %v549
    // Predicated region
    $region22: #{tpu_custom_call.1} parent=1 // pred_check
      %p558 = pneg %p40
    $region23: #{tpu_custom_call.1} parent=1 // pred_check_branch
      %560 = sbr.rel (%p558) target = $region25
    $region24: #{tpu_custom_call.1} parent=1 // pred_region
      %v561 = vld [vmem:[#allocation2] sm:$0xff]
      %v562 = vld [vmem:[#allocation2 + $0x8] sm:$0xff]
      %v563 = vld [vmem:[#allocation2 + $0x10] sm:$0xff]
      %v564 = vld [vmem:[#allocation2 + $0x18] sm:$0xff]
      %v565 = vld [vmem:[#allocation2 + $0x20] sm:$0xff]
      %v566 = vld [vmem:[#allocation2 + $0x28] sm:$0xff]
      %v567 = vld [vmem:[#allocation2 + $0x30] sm:$0xff]
      %v568 = vld [vmem:[#allocation2 + $0x38] sm:$0xff]
      %v569 = vpack.c.bf16 %v565, %v561
      %v570 = vpack.c.bf16 %v566, %v562
      %v571 = vpack.c.bf16 %v567, %v563
      %v572 = vpack.c.bf16 %v568, %v564
      %v577 = vunpack.c.l.b16 %v569
      %v578 = vunpack.c.l.b16 %v570
      %v579 = vunpack.c.l.b16 %v571
      %v580 = vunpack.c.l.b16 %v572
      %v581 = vunpack.c.h.b16 %v569
      %v582 = vunpack.c.h.b16 %v570
      %v583 = vunpack.c.h.b16 %v571
      %v584 = vunpack.c.h.b16 %v572
      %v585 = vpack.c.b16 %v578, %v577
      %v586 = vpack.c.b16 %v580, %v579
      %v587 = vpack.c.b16 %v582, %v581
      %v588 = vpack.c.b16 %v584, %v583
      %593 = vst [vmem:[#allocation8] sm:$0xff] %v585
      %594 = vst [vmem:[#allocation8 + $0x8] sm:$0xff] %v586
      %595 = vst [vmem:[#allocation8 + $0x10] sm:$0xff] %v587
      %596 = vst [vmem:[#allocation8 + $0x18] sm:$0xff] %v588
    $region25: #{tpu_custom_call.1} parent=1 // pred_fallthru
      _
    // Predicated region
    $region26: #{tpu_custom_call.1} parent=1 // pred_check
      _
    $region27: #{tpu_custom_call.1} parent=1 // pred_check_branch
      %598 = sbr.rel (0) target = $region29
    $region28: #{tpu_custom_call.1} parent=1 // pred_region
      %s600 = ssub.s32 512, 512
      %601 = vsyncadd [#allocation5], %s600
      %s602 = sshll.u32 [#allocation8], 4
      %s603 = int_to_ptr.vmem [resolvable:$true] %s602
      %608 = dma.vmem_to_hbm [thread:$0]  %s603, 512, %s2, [#allocation5], 256, 256, 16
    $region29: #{tpu_custom_call.1} parent=1 // pred_fallthru
      _
    // Predicated region
    $region30: #{tpu_custom_call.1} parent=1 // pred_check
      _
    $region31: #{tpu_custom_call.1} parent=1 // pred_check_branch
      %610 = sbr.rel (0) target = $region33
    $region32: #{tpu_custom_call.1} parent=1 // pred_region
      %611 = dma.done [#allocation5], 512
    $region33: #{tpu_custom_call.1} parent=1 // pred_fallthru
      _
    %612 = vsyncpa [#allocation4], 1
    %613 = vsyncpa [#allocation7], 1
    %614 = vsyncpa [#allocation5], 1

</llo_original>
